<compile_context>
chip_gen: v7x
topology: tpu7x:2x2x1
jax: 0.10.0
libtpu: 0.0.40
codegen_flags: <defaults>
</compile_context>

<pallas_src>
import functools

import jax
import jax.numpy as jnp
from jax.experimental import pallas as pl
from jax.experimental.pallas import tpu as pltpu

HIDDEN = 128
LANES = 128          # lane-dense width for weights / fused head / output
W1_ROWS = 8          # sublane-padded rows reserved for the fc1 weight
BIAS_ROWS = 8        # one sublane tile carrying the three bias rows

# packed parameter slab layout (rows; every row is LANES wide, f32):
#   [0,              W1_ROWS)            fc1 weight (first num_inputs rows used)
#   [W1_ROWS,        W1_ROWS+BIAS_ROWS)  row 0: b1, row 1: b2, row 2: fused head bias
#   [W2_OFF,         W2_OFF+HIDDEN)      fc2 weight
#   [WH_OFF,         WH_OFF+HIDDEN)      fused actor|critic head weight
B1_ROW = W1_ROWS
W2_OFF = W1_ROWS + BIAS_ROWS
WH_OFF = W2_OFF + HIDDEN
TOTAL_ROWS = WH_OFF + HIDDEN  # 272


def _mlp_kernel(x_ref, p_ref, out_ref, *, num_inputs, num_outputs):
    x = x_ref[...]                                         # (B, num_inputs)

    # static views into the packed parameter slab (zero runtime cost)
    w1 = p_ref[0:num_inputs, :]                            # (num_inputs, 128)
    b1 = p_ref[B1_ROW:B1_ROW + 1, :]                       # (1, 128)
    b2 = p_ref[B1_ROW + 1:B1_ROW + 2, :]                   # (1, 128)
    bh = p_ref[B1_ROW + 2:B1_ROW + 3, :]                   # (1, 128)
    w2 = p_ref[W2_OFF:W2_OFF + HIDDEN, :]                  # (128, 128)
    wh = p_ref[WH_OFF:WH_OFF + HIDDEN, :]                  # (128, 128)

    # fc1 + relu
    h1 = jnp.dot(x, w1, preferred_element_type=jnp.float32) + b1
    h1 = jnp.maximum(h1, 0.0)

    # fc2 + relu
    h2 = jnp.dot(h1, w2, preferred_element_type=jnp.float32) + b2
    h2 = jnp.maximum(h2, 0.0)

    # fused actor|critic head: one (HIDDEN -> 128) matmul.
    #   lanes [0, num_outputs)      -> actor logits
    #   lane   num_outputs          -> critic value
    #   lanes (num_outputs, LANES)  -> zero padding (zero weights / biases)
    z = jnp.dot(h2, wh, preferred_element_type=jnp.float32) + bh

    lane = jax.lax.broadcasted_iota(jnp.int32, z.shape, dimension=1)
    is_policy = lane < num_outputs

    # numerically-stable softmax restricted to the policy lanes
    masked = jnp.where(is_policy, z, jnp.float32(-1e30))
    m = jnp.max(masked, axis=-1, keepdims=True)
    e = jnp.where(is_policy, jnp.exp(z - m), 0.0)
    denom = jnp.sum(e, axis=-1, keepdims=True)
    policy = e * pl.reciprocal(denom, approx=False)        # EUP slot, exact

    # single lane-dense store: [policy | value | 0...]
    out_ref[...] = jnp.where(is_policy, policy, z)


def actor_critic_forward(x, packed_params, num_outputs):
    """x: (B, num_inputs) f32. Returns (policy (B, num_outputs), value (B, 1))."""
    B, num_inputs = x.shape

    vmem = pl.BlockSpec(memory_space=pltpu.MemorySpace.VMEM)
    out = pl.pallas_call(
        functools.partial(_mlp_kernel,
                          num_inputs=num_inputs,
                          num_outputs=num_outputs),
        out_shape=jax.ShapeDtypeStruct((B, LANES), jnp.float32),
        in_specs=[vmem, vmem],
        out_specs=vmem,
    )(x, packed_params)

    policy = out[:, :num_outputs]
    value = out[:, num_outputs:num_outputs + 1]
    return policy, value


def init_params(key, num_inputs, num_outputs):
    """Deterministic init mimicking nn.Linear's uniform(-1/sqrt(fan_in), ...)."""
    def linear(k, fan_in, fan_out):
        kw, kb = jax.random.split(k)
        bound = 1.0 / jnp.sqrt(jnp.float32(fan_in))
        w = jax.random.uniform(kw, (fan_in, fan_out), jnp.float32, -bound, bound)
        b = jax.random.uniform(kb, (1, fan_out), jnp.float32, -bound, bound)
        return w, b

    k1, k2, k3, k4 = jax.random.split(key, 4)
    w1, b1 = linear(k1, num_inputs, HIDDEN)
    w2, b2 = linear(k2, HIDDEN, HIDDEN)
    wa, ba = linear(k3, HIDDEN, num_outputs)
    wc, bc = linear(k4, HIDDEN, 1)
    return (w1, b1, w2, b2, wa, ba, wc, bc)


def pack_params(params, num_inputs, num_outputs):
    """Pack all weights + biases into one lane-dense (272, 128) f32 slab.

    Done once, outside the per-step call path, so the per-step kernel has a
    single parameter DMA.
    """
    w1, b1, w2, b2, wa, ba, wc, bc = params

    # fused actor|critic head, zero-padded to 128 lanes
    pad_out = LANES - (num_outputs + 1)
    wh = jnp.concatenate([wa, wc, jnp.zeros((HIDDEN, pad_out), jnp.float32)], axis=1)
    bh = jnp.concatenate([ba, bc, jnp.zeros((1, pad_out), jnp.float32)], axis=1)

    # fc1 weight padded to a full sublane tile
    w1_pad = jnp.zeros((W1_ROWS, LANES), jnp.float32).at[:num_inputs, :].set(w1)

    # all biases share one sublane tile
    bias_tile = jnp.zeros((BIAS_ROWS, LANES), jnp.float32)
    bias_tile = bias_tile.at[0, :].set(b1[0]).at[1, :].set(b2[0]).at[2, :].set(bh[0])

    packed = jnp.concatenate([w1_pad, bias_tile, w2, wh], axis=0)
    assert packed.shape == (TOTAL_ROWS, LANES)
    return packed


if __name__ == "__main__":
    num_inputs = 4     # CartPole observation dim
    num_outputs = 2    # CartPole actions
    batch = 8

    key = jax.random.PRNGKey(0)
    kx, kp = jax.random.split(key)
    x = jax.random.normal(kx, (batch, num_inputs), jnp.float32)
    params = init_params(kp, num_inputs, num_outputs)
    packed = pack_params(params, num_inputs, num_outputs)

    fwd = jax.jit(actor_critic_forward, static_argnums=2)
    policy, value = fwd(x, packed, num_outputs)
    jax.block_until_ready((policy, value))

    # sanity: shapes + softmax rows sum to 1
    assert policy.shape == (batch, num_outputs)
    assert value.shape == (batch, 1)
    assert jnp.allclose(jnp.sum(policy, axis=-1), 1.0, atol=1e-5)

    # cross-check against a plain-JAX reference of the unfused module
    w1, b1, w2, b2, wa, ba, wc, bc = params
    h1 = jnp.maximum(x @ w1 + b1, 0.0)
    h2 = jnp.maximum(h1 @ w2 + b2, 0.0)
    ref_policy = jax.nn.softmax(h2 @ wa + ba, axis=-1)
    ref_value = h2 @ wc + bc
    assert jnp.allclose(policy, ref_policy, atol=1e-5)
    assert jnp.allclose(value, ref_value, atol=1e-5)

    print("KERNEL_OK")
</pallas_src>

<mosaic_0001>
module attributes {stable_mosaic.version = 11 : i64} {
  func.func @_mlp_kernel(%arg0: memref<8x4xf32, #tpu.memory_space<vmem>>, %arg1: memref<272x128xf32, #tpu.memory_space<vmem>>, %arg2: memref<8x128xf32, #tpu.memory_space<vmem>>) attributes {dimension_semantics = [], scalar_prefetch = 0 : i64, scratch_operands = 0 : i64, tpu.core_type = #tpu.core_type<tc>} {
    %c0 = arith.constant 0 : index
    %c0_0 = arith.constant 0 : index
    %0 = vector.load %arg0[%c0, %c0_0] : memref<8x4xf32, #tpu.memory_space<vmem>>, vector<8x4xf32>
    %c0_1 = arith.constant 0 : index
    %c0_2 = arith.constant 0 : index
    %1 = vector.load %arg1[%c0_1, %c0_2] : memref<272x128xf32, #tpu.memory_space<vmem>>, vector<4x128xf32>
    %c8 = arith.constant 8 : index
    %c0_3 = arith.constant 0 : index
    %2 = vector.load %arg1[%c8, %c0_3] : memref<272x128xf32, #tpu.memory_space<vmem>>, vector<1x128xf32>
    %c9 = arith.constant 9 : index
    %c0_4 = arith.constant 0 : index
    %3 = vector.load %arg1[%c9, %c0_4] : memref<272x128xf32, #tpu.memory_space<vmem>>, vector<1x128xf32>
    %c10 = arith.constant 10 : index
    %c0_5 = arith.constant 0 : index
    %4 = vector.load %arg1[%c10, %c0_5] : memref<272x128xf32, #tpu.memory_space<vmem>>, vector<1x128xf32>
    %c16 = arith.constant 16 : index
    %c0_6 = arith.constant 0 : index
    %5 = vector.load %arg1[%c16, %c0_6] : memref<272x128xf32, #tpu.memory_space<vmem>>, vector<128x128xf32>
    %c144 = arith.constant 144 : index
    %c0_7 = arith.constant 0 : index
    %6 = vector.load %arg1[%c144, %c0_7] : memref<272x128xf32, #tpu.memory_space<vmem>>, vector<128x128xf32>
    %cst = arith.constant dense<0.000000e+00> : vector<8x128xf32>
    %7 = tpu.matmul %0, %1, %cst {dimension_numbers = #tpu.dot_dimension_numbers<[1], [0], [0], [1], [0, 0, 1, 1], [], []>} : vector<8x4xf32>, vector<4x128xf32>, vector<8x128xf32> -> vector<8x128xf32>
    %8 = vector.broadcast %2 : vector<1x128xf32> to vector<8x128xf32>
    %9 = arith.addf %7, %8 : vector<8x128xf32>
    %cst_8 = arith.constant 0.000000e+00 : f32
    %10 = vector.broadcast %cst_8 : f32 to vector<8x128xf32>
    %11 = arith.maximumf %9, %10 : vector<8x128xf32>
    %cst_9 = arith.constant dense<0.000000e+00> : vector<8x128xf32>
    %12 = tpu.matmul %11, %5, %cst_9 {dimension_numbers = #tpu.dot_dimension_numbers<[1], [0], [0], [1], [0, 0, 1, 1], [], []>} : vector<8x128xf32>, vector<128x128xf32>, vector<8x128xf32> -> vector<8x128xf32>
    %13 = vector.broadcast %3 : vector<1x128xf32> to vector<8x128xf32>
    %14 = arith.addf %12, %13 : vector<8x128xf32>
    %cst_10 = arith.constant 0.000000e+00 : f32
    %15 = vector.broadcast %cst_10 : f32 to vector<8x128xf32>
    %16 = arith.maximumf %14, %15 : vector<8x128xf32>
    %cst_11 = arith.constant dense<0.000000e+00> : vector<8x128xf32>
    %17 = tpu.matmul %16, %6, %cst_11 {dimension_numbers = #tpu.dot_dimension_numbers<[1], [0], [0], [1], [0, 0, 1, 1], [], []>} : vector<8x128xf32>, vector<128x128xf32>, vector<8x128xf32> -> vector<8x128xf32>
    %18 = vector.broadcast %4 : vector<1x128xf32> to vector<8x128xf32>
    %19 = arith.addf %17, %18 : vector<8x128xf32>
    %20 = tpu.iota {dimensions = array<i32: 1>} : vector<8x128xi32>
    %c2_i32 = arith.constant 2 : i32
    %21 = vector.broadcast %c2_i32 : i32 to vector<8x128xi32>
    %22 = arith.cmpi slt, %20, %21 : vector<8x128xi32>
    %cst_12 = arith.constant -1.000000e+30 : f32
    %23 = vector.broadcast %cst_12 : f32 to vector<8x128xf32>
    %24 = arith.select %22, %19, %23 : vector<8x128xi1>, vector<8x128xf32>
    %cst_13 = arith.constant dense<0xFF800000> : vector<8xf32>
    %25 = vector.multi_reduction <maximumf>, %24, %cst_13 [1] : vector<8x128xf32> to vector<8xf32>
    %26 = vector.shape_cast %25 : vector<8xf32> to vector<8x1xf32>
    %27 = vector.broadcast %26 : vector<8x1xf32> to vector<8x128xf32>
    %28 = arith.subf %19, %27 : vector<8x128xf32>
    %29 = math.exp %28 : vector<8x128xf32>
    %cst_14 = arith.constant 0.000000e+00 : f32
    %30 = vector.broadcast %cst_14 : f32 to vector<8x128xf32>
    %31 = arith.select %22, %29, %30 : vector<8x128xi1>, vector<8x128xf32>
    %cst_15 = arith.constant dense<0.000000e+00> : vector<8xf32>
    %32 = vector.multi_reduction <add>, %31, %cst_15 [1] : vector<8x128xf32> to vector<8xf32>
    %33 = vector.shape_cast %32 : vector<8xf32> to vector<8x1xf32>
    %34 = tpu.reciprocal %33 : vector<8x1xf32> -> vector<8x1xf32>
    %35 = vector.broadcast %34 : vector<8x1xf32> to vector<8x128xf32>
    %36 = arith.mulf %31, %35 : vector<8x128xf32>
    %37 = arith.select %22, %36, %19 : vector<8x128xi1>, vector<8x128xf32>
    %c0_16 = arith.constant 0 : index
    %c0_17 = arith.constant 0 : index
    %38 = vector.load %arg2[%c0_16, %c0_17] : memref<8x128xf32, #tpu.memory_space<vmem>>, vector<8x128xf32>
    tpu.vector_store %arg2[%c0_16, %c0_17], %37 {strides = array<i32>} : memref<8x128xf32, #tpu.memory_space<vmem>>, vector<8x128xf32>,
    return
  }
}

</mosaic_0001>

<llo_original>
// kernel: actor_critic_forward.1
$region0: #{actor_critic_forward.1}
  #allocation0 [shape = 'u32[]', space=smem, size = 0x4, offset = 0x4, fixed_abs, tag = 'smem constant byte address 0x4 - core index']
  #allocation1 [shape = 'u32[144,128]{1,0:T(1,128)}', space=vmem, size = 0x12000, scoped, tag = 'internal scratch']
  %s0 = inlined_call_operand.vmem [shape: f32[8,4], index: 0, kind: input, shape index: {}]
  %s1 = inlined_call_operand.hbm [shape: f32[272,128], index: 1, kind: input, shape index: {}]
  %s2 = inlined_call_operand.vmem [shape: f32[8,128], index: 2, kind: output, shape index: {}]
  %s3 = sld [smem:[#allocation0]]
  $region22: #{actor_critic_forward.1} parent=0
    _
  %s5 = ssub.s32 1, %s3
  %s6 = scalar_select 0, %s5, %s3
  $region1: #{actor_critic_forward.1} parent=0
    #allocation2 [shape = 'u8[139264]{0}', space=vmem, size = 0x22000, scoped, tag = 'input window, operand 1, single buffered']
    #allocation3 [shape = 's32[1]{0}', space=sflag, size = 0x4, scoped, tag = 'scoped memory for actor_critic_forward.1']
    %7 = vsyncpa [#allocation3], 0
    // Predicated region
    $region2: #{actor_critic_forward.1} parent=1 // pred_check
      _
    $region3: #{actor_critic_forward.1} parent=1 // pred_check_branch
      %9 = sbr.rel (0) target = $region5
    $region4: #{actor_critic_forward.1} parent=1 // pred_region
      _
    $region5: #{actor_critic_forward.1} parent=1 // pred_fallthru
      _
    // Predicated region
    $region6: #{actor_critic_forward.1} parent=1 // pred_check
      _
    $region7: #{actor_critic_forward.1} parent=1 // pred_check_branch
      %11 = sbr.rel (0) target = $region9
    $region8: #{actor_critic_forward.1} parent=1 // pred_region
      %s13 = ssub.s32 4352, 4352
      %14 = vsyncadd [#allocation3], %s13
      %s15 = sshll.u32 [#allocation2], 4
      %s16 = int_to_ptr.vmem [resolvable:$true] %s15
      %21 = dma.hbm_to_vmem [thread:$0]  %s1, 4352, %s16, [#allocation3], 128, 128, 8
    $region9: #{actor_critic_forward.1} parent=1 // pred_fallthru
      _
    // Predicated region
    $region10: #{actor_critic_forward.1} parent=1 // pred_check
      _
    $region11: #{actor_critic_forward.1} parent=1 // pred_check_branch
      %23 = sbr.rel (0) target = $region13
    $region12: #{actor_critic_forward.1} parent=1 // pred_region
      %24 = dma.done [#allocation3], 4352
    $region13: #{actor_critic_forward.1} parent=1 // pred_fallthru
      _
    %v25 = vld [vmem:[%s0] sm:$0xff]
    %v26 = vld [vmem:[#allocation2] sm:$0xf]
    %v27 = vld [vmem:[#allocation2 + $0x8] sm:$0x1]
    %v28 = vld [vmem:[#allocation2 + $0x9] sm:$0x1]
    %v29 = vld [vmem:[#allocation2 + $0xa] sm:$0x1]
    %v30 = vld [vmem:[#allocation2 + $0x10] sm:$0xff]
    %v31 = vld [vmem:[#allocation2 + $0x18] sm:$0xff]
    %v32 = vld [vmem:[#allocation2 + $0x20] sm:$0xff]
    %v33 = vld [vmem:[#allocation2 + $0x28] sm:$0xff]
    %v34 = vld [vmem:[#allocation2 + $0x30] sm:$0xff]
    %v35 = vld [vmem:[#allocation2 + $0x38] sm:$0xff]
    %v36 = vld [vmem:[#allocation2 + $0x40] sm:$0xff]
    %v37 = vld [vmem:[#allocation2 + $0x48] sm:$0xff]
    %v38 = vld [vmem:[#allocation2 + $0x50] sm:$0xff]
    %v39 = vld [vmem:[#allocation2 + $0x58] sm:$0xff]
    %v40 = vld [vmem:[#allocation2 + $0x60] sm:$0xff]
    %v41 = vld [vmem:[#allocation2 + $0x68] sm:$0xff]
    %v42 = vld [vmem:[#allocation2 + $0x70] sm:$0xff]
    %v43 = vld [vmem:[#allocation2 + $0x78] sm:$0xff]
    %v44 = vld [vmem:[#allocation2 + $0x80] sm:$0xff]
    %v45 = vld [vmem:[#allocation2 + $0x88] sm:$0xff]
    %v46 = vld [vmem:[#allocation2 + $0x90] sm:$0xff]
    %v47 = vld [vmem:[#allocation2 + $0x98] sm:$0xff]
    %v48 = vld [vmem:[#allocation2 + $0xa0] sm:$0xff]
    %v49 = vld [vmem:[#allocation2 + $0xa8] sm:$0xff]
    %v50 = vld [vmem:[#allocation2 + $0xb0] sm:$0xff]
    %v51 = vld [vmem:[#allocation2 + $0xb8] sm:$0xff]
    %v52 = vld [vmem:[#allocation2 + $0xc0] sm:$0xff]
    %v53 = vld [vmem:[#allocation2 + $0xc8] sm:$0xff]
    %v54 = vld [vmem:[#allocation2 + $0xd0] sm:$0xff]
    %v55 = vld [vmem:[#allocation2 + $0xd8] sm:$0xff]
    %v56 = vld [vmem:[#allocation2 + $0xe0] sm:$0xff]
    %v57 = vld [vmem:[#allocation2 + $0xe8] sm:$0xff]
    %v58 = vld [vmem:[#allocation2 + $0xf0] sm:$0xff]
    %v59 = vld [vmem:[#allocation2 + $0xf8] sm:$0xff]
    %v60 = vld [vmem:[#allocation2 + $0x100] sm:$0xff]
    %v61 = vld [vmem:[#allocation2 + $0x108] sm:$0xff]
    %v62 = vlaneseq
    %v63 = vshrl.u32 %v62, 7
    %v64 = vsub.s32 0, %v63
    %v65 = vrot.slane %v27, %v64
    %vm66 = vcmask 31744
    %v68 = vsel %vm66, %v25, 0
    %vm70 = vcmask 1043456
    %v72 = vsel %vm70, %v26, 0
    %74 = vmatprep.subr.mxu0 0.0
    %75 = vmatpush1.msra.mxu0 %v72
    %76 = vmatprep.subr.mxu0 0.0
    %77 = vmatpush1.msra.mxu0 0.0
    %78 = vmatprep.subr.mxu0 0.0
    %79 = vmatpush1.msra.mxu0 0.0
    %80 = vmatprep.subr.mxu0 0.0
    %81 = vmatpush1.msra.mxu0 0.0
    %82 = vmatprep.subr.mxu0 0.0
    %83 = vmatpush1.msra.mxu0 0.0
    %84 = vmatprep.subr.mxu0 0.0
    %85 = vmatpush1.msra.mxu0 0.0
    %86 = vmatprep.subr.mxu0 0.0
    %87 = vmatpush1.msra.mxu0 0.0
    %88 = vmatprep.subr.mxu0 0.0
    %89 = vmatpush1.msra.mxu0 0.0
    %90 = vmatprep.subr.mxu0 0.0
    %91 = vmatpush1.msra.mxu0 0.0
    %92 = vmatprep.subr.mxu0 0.0
    %93 = vmatpush1.msra.mxu0 0.0
    %94 = vmatprep.subr.mxu0 0.0
    %95 = vmatpush1.msra.mxu0 0.0
    %96 = vmatprep.subr.mxu0 0.0
    %97 = vmatpush1.msra.mxu0 0.0
    %98 = vmatprep.subr.mxu0 0.0
    %99 = vmatpush1.msra.mxu0 0.0
    %100 = vmatprep.subr.mxu0 0.0
    %101 = vmatpush1.msra.mxu0 0.0
    %102 = vmatprep.subr.mxu0 0.0
    %103 = vmatpush1.msra.mxu0 0.0
    %104 = vmatprep.subr.mxu0 0.0
    %105 = vmatpush1.msra.mxu0 0.0
    %106 = vmatprep.subr.mxu0 0.0
    %107 = vmatpush1.msra.mxu0 0.0
    %108 = vmatprep.subr.mxu0 0.0
    %109 = vmatpush1.msra.mxu0 0.0
    %110 = vmatprep.subr.mxu0 0.0
    %111 = vmatpush1.msra.mxu0 0.0
    %112 = vmatprep.subr.mxu0 0.0
    %113 = vmatpush1.msra.mxu0 0.0
    %114 = vmatprep.subr.mxu0 0.0
    %115 = vmatpush1.msra.mxu0 0.0
    %116 = vmatprep.subr.mxu0 0.0
    %117 = vmatpush1.msra.mxu0 0.0
    %118 = vmatprep.subr.mxu0 0.0
    %119 = vmatpush1.msra.mxu0 0.0
    %120 = vmatprep.subr.mxu0 0.0
    %121 = vmatpush1.msra.mxu0 0.0
    %122 = vmatprep.subr.mxu0 0.0
    %123 = vmatpush1.msra.mxu0 0.0
    %124 = vmatprep.subr.mxu0 0.0
    %125 = vmatpush1.msra.mxu0 0.0
    %126 = vmatprep.subr.mxu0 0.0
    %127 = vmatpush1.msra.mxu0 0.0
    %128 = vmatprep.subr.mxu0 0.0
    %129 = vmatpush1.msra.mxu0 0.0
    %130 = vmatprep.subr.mxu0 0.0
    %131 = vmatpush1.msra.mxu0 0.0
    %132 = vmatprep.subr.mxu0 0.0
    %133 = vmatpush1.msra.mxu0 0.0
    %134 = vmatprep.subr.mxu0 0.0
    %135 = vmatpush1.msra.mxu0 0.0
    %136 = vmatprep.subr.mxu0 0.0
    %137 = vmatpush1.msra.mxu0 0.0
    %138 = vmatprep.mubr.f32.mxu0 0.0
    %139 = vmatmul.mubr.f32.gmra.mrb[0].mxu0 %v68
    %v140 = vpop.f32.mrb[0].mxu0
    %v141 = vadd.f32 %v65, %v140
    %v142 = vpop.f32.mrb[0].mxu0
    %143 = vdwg.mxu0
    %v144 = vmax.f32 %v141, 0.0
    %v145 = vlaneseq
    %v146 = vshrl.u32 %v145, 7
    %v147 = vsub.s32 0, %v146
    %v148 = vrot.slane %v28, %v147
    %149 = vmatprep.subr.mxu0 0.0
    %150 = vmatpush1.msra.mxu0 %v30
    %151 = vmatprep.subr.mxu0 0.0
    %152 = vmatpush1.msra.mxu0 %v31
    %153 = vmatprep.subr.mxu0 0.0
    %154 = vmatpush1.msra.mxu0 %v32
    %155 = vmatprep.subr.mxu0 0.0
    %156 = vmatpush1.msra.mxu0 %v33
    %157 = vmatprep.subr.mxu0 0.0
    %158 = vmatpush1.msra.mxu0 %v34
    %159 = vmatprep.subr.mxu0 0.0
    %160 = vmatpush1.msra.mxu0 %v35
    %161 = vmatprep.subr.mxu0 0.0
    %162 = vmatpush1.msra.mxu0 %v36
    %163 = vmatprep.subr.mxu0 0.0
    %164 = vmatpush1.msra.mxu0 %v37
    %165 = vmatprep.subr.mxu0 0.0
    %166 = vmatpush1.msra.mxu0 %v38
    %167 = vmatprep.subr.mxu0 0.0
    %168 = vmatpush1.msra.mxu0 %v39
    %169 = vmatprep.subr.mxu0 0.0
    %170 = vmatpush1.msra.mxu0 %v40
    %171 = vmatprep.subr.mxu0 0.0
    %172 = vmatpush1.msra.mxu0 %v41
    %173 = vmatprep.subr.mxu0 0.0
    %174 = vmatpush1.msra.mxu0 %v42
    %175 = vmatprep.subr.mxu0 0.0
    %176 = vmatpush1.msra.mxu0 %v43
    %177 = vmatprep.subr.mxu0 0.0
    %178 = vmatpush1.msra.mxu0 %v44
    %179 = vmatprep.subr.mxu0 0.0
    %180 = vmatpush1.msra.mxu0 %v45
    %181 = vmatprep.subr.mxu0 0.0
    %182 = vmatpush1.msra.mxu0 0.0
    %183 = vmatprep.subr.mxu0 0.0
    %184 = vmatpush1.msra.mxu0 0.0
    %185 = vmatprep.subr.mxu0 0.0
    %186 = vmatpush1.msra.mxu0 0.0
    %187 = vmatprep.subr.mxu0 0.0
    %188 = vmatpush1.msra.mxu0 0.0
    %189 = vmatprep.subr.mxu0 0.0
    %190 = vmatpush1.msra.mxu0 0.0
    %191 = vmatprep.subr.mxu0 0.0
    %192 = vmatpush1.msra.mxu0 0.0
    %193 = vmatprep.subr.mxu0 0.0
    %194 = vmatpush1.msra.mxu0 0.0
    %195 = vmatprep.subr.mxu0 0.0
    %196 = vmatpush1.msra.mxu0 0.0
    %197 = vmatprep.subr.mxu0 0.0
    %198 = vmatpush1.msra.mxu0 0.0
    %199 = vmatprep.subr.mxu0 0.0
    %200 = vmatpush1.msra.mxu0 0.0
    %201 = vmatprep.subr.mxu0 0.0
    %202 = vmatpush1.msra.mxu0 0.0
    %203 = vmatprep.subr.mxu0 0.0
    %204 = vmatpush1.msra.mxu0 0.0
    %205 = vmatprep.subr.mxu0 0.0
    %206 = vmatpush1.msra.mxu0 0.0
    %207 = vmatprep.subr.mxu0 0.0
    %208 = vmatpush1.msra.mxu0 0.0
    %209 = vmatprep.subr.mxu0 0.0
    %210 = vmatpush1.msra.mxu0 0.0
    %211 = vmatprep.subr.mxu0 0.0
    %212 = vmatpush1.msra.mxu0 0.0
    %213 = vmatprep.mubr.f32.mxu0 0.0
    %214 = vmatmul.mubr.f32.gmra.mrb[0].mxu0 %v144
    %v215 = vpop.f32.mrb[0].mxu0
    %v216 = vadd.f32 %v148, %v215
    %v217 = vpop.f32.mrb[0].mxu0
    %218 = vdwg.mxu0
    %v219 = vmax.f32 %v216, 0.0
    %v220 = vlaneseq
    %v221 = vshrl.u32 %v220, 7
    %v222 = vsub.s32 0, %v221
    %v223 = vrot.slane %v29, %v222
    %224 = vmatprep.subr.mxu0 0.0
    %225 = vmatpush1.msra.mxu0 %v46
    %226 = vmatprep.subr.mxu0 0.0
    %227 = vmatpush1.msra.mxu0 %v47
    %228 = vmatprep.subr.mxu0 0.0
    %229 = vmatpush1.msra.mxu0 %v48
    %230 = vmatprep.subr.mxu0 0.0
    %231 = vmatpush1.msra.mxu0 %v49
    %232 = vmatprep.subr.mxu0 0.0
    %233 = vmatpush1.msra.mxu0 %v50
    %234 = vmatprep.subr.mxu0 0.0
    %235 = vmatpush1.msra.mxu0 %v51
    %236 = vmatprep.subr.mxu0 0.0
    %237 = vmatpush1.msra.mxu0 %v52
    %238 = vmatprep.subr.mxu0 0.0
    %239 = vmatpush1.msra.mxu0 %v53
    %240 = vmatprep.subr.mxu0 0.0
    %241 = vmatpush1.msra.mxu0 %v54
    %242 = vmatprep.subr.mxu0 0.0
    %243 = vmatpush1.msra.mxu0 %v55
    %244 = vmatprep.subr.mxu0 0.0
    %245 = vmatpush1.msra.mxu0 %v56
    %246 = vmatprep.subr.mxu0 0.0
    %247 = vmatpush1.msra.mxu0 %v57
    %248 = vmatprep.subr.mxu0 0.0
    %249 = vmatpush1.msra.mxu0 %v58
    %250 = vmatprep.subr.mxu0 0.0
    %251 = vmatpush1.msra.mxu0 %v59
    %252 = vmatprep.subr.mxu0 0.0
    %253 = vmatpush1.msra.mxu0 %v60
    %254 = vmatprep.subr.mxu0 0.0
    %255 = vmatpush1.msra.mxu0 %v61
    %256 = vmatprep.subr.mxu0 0.0
    %257 = vmatpush1.msra.mxu0 0.0
    %258 = vmatprep.subr.mxu0 0.0
    %259 = vmatpush1.msra.mxu0 0.0
    %260 = vmatprep.subr.mxu0 0.0
    %261 = vmatpush1.msra.mxu0 0.0
    %262 = vmatprep.subr.mxu0 0.0
    %263 = vmatpush1.msra.mxu0 0.0
    %264 = vmatprep.subr.mxu0 0.0
    %265 = vmatpush1.msra.mxu0 0.0
    %266 = vmatprep.subr.mxu0 0.0
    %267 = vmatpush1.msra.mxu0 0.0
    %268 = vmatprep.subr.mxu0 0.0
    %269 = vmatpush1.msra.mxu0 0.0
    %270 = vmatprep.subr.mxu0 0.0
    %271 = vmatpush1.msra.mxu0 0.0
    %272 = vmatprep.subr.mxu0 0.0
    %273 = vmatpush1.msra.mxu0 0.0
    %274 = vmatprep.subr.mxu0 0.0
    %275 = vmatpush1.msra.mxu0 0.0
    %276 = vmatprep.subr.mxu0 0.0
    %277 = vmatpush1.msra.mxu0 0.0
    %278 = vmatprep.subr.mxu0 0.0
    %279 = vmatpush1.msra.mxu0 0.0
    %280 = vmatprep.subr.mxu0 0.0
    %281 = vmatpush1.msra.mxu0 0.0
    %282 = vmatprep.subr.mxu0 0.0
    %283 = vmatpush1.msra.mxu0 0.0
    %284 = vmatprep.subr.mxu0 0.0
    %285 = vmatpush1.msra.mxu0 0.0
    %286 = vmatprep.subr.mxu0 0.0
    %287 = vmatpush1.msra.mxu0 0.0
    %288 = vmatprep.mubr.f32.mxu0 0.0
    %289 = vmatmul.mubr.f32.gmra.mrb[0].mxu0 %v219
    %v290 = vpop.f32.mrb[0].mxu0
    %v291 = vadd.f32 %v223, %v290
    %v292 = vpop.f32.mrb[0].mxu0
    %293 = vdwg.mxu0
    %v294 = vlaneseq
    %v295 = vand.u32 %v294, 127
    %vm296 = vcmp.lt.s32.totalorder %v295, 2
    %v297 = vsel %vm296, %v291, -1e+30
    %298 = vmax.xlane.f32.xlu0 %v297
    %v299 = vpop.xlane.xlu0 %298
    %v300 = vsub.f32 %v291, %v299
    %v301 = vmul.f32 %v300, 1.442695
    %v302 = vpow.pop %v301
    %v303 = vsel %vm296, %v302, 0.0
    %304 = vadd.xlane.f32.xlu0 %v303
    %v305 = vpop.xlane.xlu0 %304
    %v306 = vrcp.pop %v305
    %v307 = vmul.f32 %v303, %v306
    %v308 = vsel %vm296, %v307, %v291
    %309 = vst [vmem:[%s2] sm:$0xff] %v308
    // Predicated region
    $region14: #{actor_critic_forward.1} parent=1 // pred_check
      _
    $region15: #{actor_critic_forward.1} parent=1 // pred_check_branch
      %311 = sbr.rel (0) target = $region17
    $region16: #{actor_critic_forward.1} parent=1 // pred_region
      _
    $region17: #{actor_critic_forward.1} parent=1 // pred_fallthru
      _
    // Predicated region
    $region18: #{actor_critic_forward.1} parent=1 // pred_check
      _
    $region19: #{actor_critic_forward.1} parent=1 // pred_check_branch
      %313 = sbr.rel (0) target = $region21
    $region20: #{actor_critic_forward.1} parent=1 // pred_region
      _
    $region21: #{actor_critic_forward.1} parent=1 // pred_fallthru
      _
    %314 = vsyncpa [#allocation3], 1

</llo_original>
